<compile_context>
chip_gen: v5e
topology: v5e:2x2
jax: 0.10.0
libtpu: 0.0.40
codegen_flags: <defaults>
</compile_context>

<pallas_src>
import functools
import math

import jax
import jax.numpy as jnp
from jax.experimental import pallas as pl
from jax.experimental.pallas import tpu as pltpu


def _round_up(x: int, m: int) -> int:
    return (x + m - 1) // m * m


def _decoder_kernel(x_ref, w_ref, b_ref, o_ref, acc_ref, *, activation: bool):
    # x_ref: (tm, tk)  w_ref: (tk, tn)  b_ref: (1, tn)  o_ref: (tm, tn)
    # acc_ref: (tm, tn) f32 scratch, resident across the K axis.
    k = pl.program_id(2)

    @pl.when(k == 0)
    def _init():
        acc_ref[...] = jnp.zeros_like(acc_ref)

    # Weight already transposed in the wrapper -> plain NN matmul on the MXU.
    acc_ref[...] += jnp.dot(
        x_ref[...], w_ref[...], preferred_element_type=jnp.float32
    )

    @pl.when(k == pl.num_programs(2) - 1)
    def _finalize():
        y = acc_ref[...] + b_ref[...]          # broadcast (1, tn) over rows
        if activation:
            y = jax.nn.sigmoid(y)              # EUP/VPU, once per output tile
        o_ref[...] = y.astype(o_ref.dtype)


def decoder_forward(x, weight, bias, activation: bool = True,
                    *, tm: int = 256, tn: int = 256, tk: int = 256):
    """x: (..., hidden) f32; weight: (outsize, hidden); bias: (outsize,).

    Tile sizes default to 256 (good for v6e/v7x MXU and well under the v7x
    64 MiB VMEM budget with double buffering); they are clamped down for
    small problems.
    """
    *lead, hidden = x.shape
    outsize = weight.shape[0]
    m = math.prod(lead) if lead else 1

    # Clamp tiles to 128-aligned padded extents (keeps (8,128) layout rules
    # and lane-dense stores even for tiny shapes).
    tm = min(tm, _round_up(m, 128))
    tn = min(tn, _round_up(outsize, 128))
    tk = min(tk, _round_up(hidden, 128))

    mp = _round_up(m, tm)
    kp = _round_up(hidden, tk)
    op = _round_up(outsize, tn)

    # Zero-pad (padded K contributes exactly 0 to the accumulation; padded
    # M rows / N cols are sliced away below).
    x2d = x.reshape(m, hidden)
    x_p = jnp.pad(x2d, ((0, mp - m), (0, kp - hidden)))
    w_p = jnp.pad(weight.T, ((0, kp - hidden), (0, op - outsize)))   # (kp, op)
    b_p = jnp.pad(bias.reshape(1, outsize), ((0, 0), (0, op - outsize)))

    grid = (mp // tm, op // tn, kp // tk)

    out_p = pl.pallas_call(
        functools.partial(_decoder_kernel, activation=activation),
        out_shape=jax.ShapeDtypeStruct((mp, op), x.dtype),
        grid_spec=pltpu.PrefetchScalarGridSpec(
            num_scalar_prefetch=0,
            grid=grid,
            in_specs=[
                pl.BlockSpec((tm, tk), lambda i, j, k: (i, k)),   # x tile
                pl.BlockSpec((tk, tn), lambda i, j, k: (k, j)),   # W^T tile
                pl.BlockSpec((1, tn), lambda i, j, k: (0, j)),    # bias tile
            ],
            out_specs=pl.BlockSpec((tm, tn), lambda i, j, k: (i, j)),
            scratch_shapes=[pltpu.VMEM((tm, tn), jnp.float32)],
        ),
        compiler_params=pltpu.CompilerParams(
            dimension_semantics=("parallel", "parallel", "arbitrary"),
        ),
    )(x_p, w_p, b_p)

    return out_p[:m, :outsize].reshape(*lead, outsize)


if __name__ == "__main__":
    # Small shapes consistent with the module: hidden=32, outsize=16,
    # input x of shape (batch=2, seq=8, hidden=32).
    batch, seq, hidden, outsize = 2, 8, 32, 16
    activation = True

    key = jax.random.PRNGKey(0)
    kx, kw, kb = jax.random.split(key, 3)

    x = jax.random.normal(kx, (batch, seq, hidden), dtype=jnp.float32)

    # Deterministic PyTorch-style nn.Linear init: U(-1/sqrt(hidden), 1/sqrt(hidden))
    bound = 1.0 / (hidden ** 0.5)
    weight = jax.random.uniform(kw, (outsize, hidden), jnp.float32, -bound, bound)
    bias = jax.random.uniform(kb, (outsize,), jnp.float32, -bound, bound)

    out = decoder_forward(x, weight, bias, activation=activation)
    out = jax.block_until_ready(out)

    # Reference check (plain JAX) to validate kernel semantics.
    ref = jnp.einsum("bsh,oh->bso", x, weight) + bias
    if activation:
        ref = jax.nn.sigmoid(ref)
    assert out.shape == (batch, seq, outsize)
    assert jnp.allclose(out, ref, atol=1e-5, rtol=1e-5)

    print("KERNEL_OK")
</pallas_src>

<mosaic_0001>
module attributes {stable_mosaic.version = 11 : i64} {
  func.func @_decoder_kernel(%arg0: i32, %arg1: i32, %arg2: i32, %arg3: memref<128x128xf32, #tpu.memory_space<vmem>>, %arg4: memref<128x128xf32, #tpu.memory_space<vmem>>, %arg5: memref<1x128xf32, #tpu.memory_space<vmem>>, %arg6: memref<128x128xf32, #tpu.memory_space<vmem>>, %arg7: memref<128x128xf32, #tpu.memory_space<vmem>>) attributes {dimension_semantics = [#tpu.dimension_semantics<parallel>, #tpu.dimension_semantics<parallel>, #tpu.dimension_semantics<arbitrary>], iteration_bounds = array<i64: 1, 1, 1>, scalar_prefetch = 0 : i64, scratch_operands = 1 : i64, tpu.core_type = #tpu.core_type<tc>, window_params = [{transform_indices = @transform_0, window_bounds = array<i64: 128, 128>}, {transform_indices = @transform_1, window_bounds = array<i64: 128, 128>}, {transform_indices = @transform_2, window_bounds = array<i64: 1, 128>}, {transform_indices = @transform_3, window_bounds = array<i64: 128, 128>}]} {
    %c0_i32 = arith.constant 0 : i32
    %0 = arith.cmpi eq, %arg2, %c0_i32 : i32
    %1 = arith.extui %0 : i1 to i32
    %c0_i32_0 = arith.constant 0 : i32
    %2 = arith.cmpi ne, %1, %c0_i32_0 : i32
    scf.if %2 {
      %cst_10 = arith.constant 0.000000e+00 : f32
      %12 = vector.broadcast %cst_10 : f32 to vector<128x128xf32>
      %c0_11 = arith.constant 0 : index
      %c0_12 = arith.constant 0 : index
      %13 = vector.load %arg7[%c0_11, %c0_12] : memref<128x128xf32, #tpu.memory_space<vmem>>, vector<128x128xf32>
      tpu.vector_store %arg7[%c0_11, %c0_12], %12 {strides = array<i32>} : memref<128x128xf32, #tpu.memory_space<vmem>>, vector<128x128xf32>,
    } else {
    }
    %c0 = arith.constant 0 : index
    %c0_1 = arith.constant 0 : index
    %3 = vector.load %arg7[%c0, %c0_1] : memref<128x128xf32, #tpu.memory_space<vmem>>, vector<128x128xf32>
    %c0_2 = arith.constant 0 : index
    %c0_3 = arith.constant 0 : index
    %4 = vector.load %arg3[%c0_2, %c0_3] : memref<128x128xf32, #tpu.memory_space<vmem>>, vector<128x128xf32>
    %c0_4 = arith.constant 0 : index
    %c0_5 = arith.constant 0 : index
    %5 = vector.load %arg4[%c0_4, %c0_5] : memref<128x128xf32, #tpu.memory_space<vmem>>, vector<128x128xf32>
    %cst = arith.constant dense<0.000000e+00> : vector<128x128xf32>
    %6 = tpu.matmul %4, %5, %cst {dimension_numbers = #tpu.dot_dimension_numbers<[1], [0], [0], [1], [0, 0, 1, 1], [], []>} : vector<128x128xf32>, vector<128x128xf32>, vector<128x128xf32> -> vector<128x128xf32>
    %7 = arith.addf %3, %6 : vector<128x128xf32>
    %c0_6 = arith.constant 0 : index
    %c0_7 = arith.constant 0 : index
    %8 = vector.load %arg7[%c0_6, %c0_7] : memref<128x128xf32, #tpu.memory_space<vmem>>, vector<128x128xf32>
    tpu.vector_store %arg7[%c0_6, %c0_7], %7 {strides = array<i32>} : memref<128x128xf32, #tpu.memory_space<vmem>>, vector<128x128xf32>,
    %c0_i32_8 = arith.constant 0 : i32
    %9 = arith.cmpi eq, %arg2, %c0_i32_8 : i32
    %10 = arith.extui %9 : i1 to i32
    %c0_i32_9 = arith.constant 0 : i32
    %11 = arith.cmpi ne, %10, %c0_i32_9 : i32
    scf.if %11 {
      %c0_10 = arith.constant 0 : index
      %c0_11 = arith.constant 0 : index
      %12 = vector.load %arg7[%c0_10, %c0_11] : memref<128x128xf32, #tpu.memory_space<vmem>>, vector<128x128xf32>
      %c0_12 = arith.constant 0 : index
      %c0_13 = arith.constant 0 : index
      %13 = vector.load %arg5[%c0_12, %c0_13] : memref<1x128xf32, #tpu.memory_space<vmem>>, vector<1x128xf32>
      %14 = vector.broadcast %13 : vector<1x128xf32> to vector<128x128xf32>
      %15 = arith.addf %12, %14 : vector<128x128xf32>
      %16 = arith.negf %15 : vector<128x128xf32>
      %17 = math.exp %16 : vector<128x128xf32>
      %cst_14 = arith.constant 1.000000e+00 : f32
      %18 = vector.broadcast %cst_14 : f32 to vector<128x128xf32>
      %19 = arith.addf %18, %17 : vector<128x128xf32>
      %20 = arith.divf %18, %19 : vector<128x128xf32>
      %c0_15 = arith.constant 0 : index
      %c0_16 = arith.constant 0 : index
      %21 = vector.load %arg6[%c0_15, %c0_16] : memref<128x128xf32, #tpu.memory_space<vmem>>, vector<128x128xf32>
      tpu.vector_store %arg6[%c0_15, %c0_16], %20 {strides = array<i32>} : memref<128x128xf32, #tpu.memory_space<vmem>>, vector<128x128xf32>,
    } else {
    }
    return
  }
  func.func @transform_0(%arg0: i32, %arg1: i32, %arg2: i32) -> (i32, i32) {
    %c0_i32 = arith.constant 0 : i32
    return %arg0, %arg2 : i32, i32
  }
  func.func @transform_1(%arg0: i32, %arg1: i32, %arg2: i32) -> (i32, i32) {
    %c0_i32 = arith.constant 0 : i32
    return %arg2, %arg1 : i32, i32
  }
  func.func @transform_2(%arg0: i32, %arg1: i32, %arg2: i32) -> (i32, i32) {
    %c0_i32 = arith.constant 0 : i32
    %c0_i32_0 = arith.constant 0 : i32
    return %c0_i32, %arg1 : i32, i32
  }
  func.func @transform_3(%arg0: i32, %arg1: i32, %arg2: i32) -> (i32, i32) {
    %c0_i32 = arith.constant 0 : i32
    return %arg0, %arg1 : i32, i32
  }
}

</mosaic_0001>

<llo_original>
// kernel: tpu_custom_call.1
$region0: #{tpu_custom_call.1}
  #allocation0 [shape = 'u32[]', space=smem, size = 0x4, offset = 0x4, fixed_abs, tag = 'smem constant byte address 0x4 - core index']
  #allocation1 [shape = 'u32[72,128]{1,0:T(1,128)}', space=vmem, size = 0x9000, scoped, tag = 'internal scratch']
  #allocation2 [shape = 'f32[128,128]{1,0:T(8,128)}', space=vmem, size = 0x10000, scoped, tag = 'scratch operand']
  %s0 = inlined_call_operand.hbm [shape: f32[128,128], index: 0, kind: input, shape index: {}]
  %s1 = inlined_call_operand.hbm [shape: f32[128,128], index: 1, kind: input, shape index: {}]
  %s2 = inlined_call_operand.vmem [shape: f32[1,128], index: 2, kind: input, shape index: {}]
  %s3 = inlined_call_operand.hbm [shape: f32[128,128], index: 3, kind: output, shape index: {}]
  %s4 = sld [smem:[#allocation0]]
  $region38: #{tpu_custom_call.1} parent=0
    _
  %s6 = ssub.s32 1, %s4
  %s7 = scalar_select 0, %s6, %s4
  $region1: #{tpu_custom_call.1} parent=0
    #allocation3 [shape = 'u8[65536]{0}', space=vmem, size = 0x10000, scoped, tag = 'input window, operand 0, single buffered']
    #allocation4 [shape = 's32[1]{0}', space=sflag, size = 0x4, scoped, tag = 'scoped memory for tpu_custom_call.1']
    #allocation5 [shape = 's32[1]{0}', space=sflag, size = 0x4, scoped, tag = 'scoped memory for tpu_custom_call.1']
    #allocation6 [shape = 'u8[65536]{0}', space=vmem, size = 0x10000, scoped, tag = 'input window, operand 1, single buffered']
    #allocation7 [shape = 's32[1]{0}', space=sflag, size = 0x4, scoped, tag = 'scoped memory for tpu_custom_call.1']
    #allocation8 [shape = 'u8[65536]{0}', space=vmem, size = 0x10000, scoped, tag = 'output window, operand 0, single buffered']
    %8 = vsyncpa [#allocation4], 0
    %9 = vsyncpa [#allocation7], 0
    %10 = vsyncpa [#allocation5], 0
    // Predicated region
    $region2: #{tpu_custom_call.1} parent=1 // pred_check
      _
    $region3: #{tpu_custom_call.1} parent=1 // pred_check_branch
      %12 = sbr.rel (0) target = $region5
    $region4: #{tpu_custom_call.1} parent=1 // pred_region
      %14 = vsyncadd [#allocation4], 0
      %s15 = sshll.u32 %s0, 4
      %s16 = int_to_ptr.hbm [resolvable:$true] %s15
      %s17 = sshll.u32 [#allocation3], 4
      %s18 = int_to_ptr.vmem [resolvable:$true] %s17
      %23 = dma.hbm_to_vmem [thread:$0]  %s16, 2048, %s18, [#allocation4], 128, 128, 8
    $region5: #{tpu_custom_call.1} parent=1 // pred_fallthru
      _
    // Predicated region
    $region6: #{tpu_custom_call.1} parent=1 // pred_check
      _
    $region7: #{tpu_custom_call.1} parent=1 // pred_check_branch
      %25 = sbr.rel (0) target = $region9
    $region8: #{tpu_custom_call.1} parent=1 // pred_region
      %27 = vsyncadd [#allocation7], 0
      %s28 = sshll.u32 %s1, 4
      %s29 = int_to_ptr.hbm [resolvable:$true] %s28
      %s30 = sshll.u32 [#allocation6], 4
      %s31 = int_to_ptr.vmem [resolvable:$true] %s30
      %36 = dma.hbm_to_vmem [thread:$0]  %s29, 2048, %s31, [#allocation7], 128, 128, 8
    $region9: #{tpu_custom_call.1} parent=1 // pred_fallthru
      _
    // Predicated region
    $region10: #{tpu_custom_call.1} parent=1 // pred_check
      _
    $region11: #{tpu_custom_call.1} parent=1 // pred_check_branch
      %38 = sbr.rel (0) target = $region13
    $region12: #{tpu_custom_call.1} parent=1 // pred_region
      _
    $region13: #{tpu_custom_call.1} parent=1 // pred_fallthru
      _
    // Predicated region
    $region14: #{tpu_custom_call.1} parent=1 // pred_check
      _
    $region15: #{tpu_custom_call.1} parent=1 // pred_check_branch
      %40 = sbr.rel (0) target = $region17
    $region16: #{tpu_custom_call.1} parent=1 // pred_region
      %42 = dma.done [#allocation4], 2048
    $region17: #{tpu_custom_call.1} parent=1 // pred_fallthru
      _
    // Predicated region
    $region18: #{tpu_custom_call.1} parent=1 // pred_check
      _
    $region19: #{tpu_custom_call.1} parent=1 // pred_check_branch
      %44 = sbr.rel (0) target = $region21
    $region20: #{tpu_custom_call.1} parent=1 // pred_region
      %46 = dma.done [#allocation7], 2048
    $region21: #{tpu_custom_call.1} parent=1 // pred_fallthru
      _
    %p47 = scmp.eq.s32.totalorder 0, 0
    // Predicated region
    $region22: #{tpu_custom_call.1} parent=1 // pred_check
      %p48 = pneg %p47
    $region23: #{tpu_custom_call.1} parent=1 // pred_check_branch
      %50 = sbr.rel (%p48) target = $region25
    $region24: #{tpu_custom_call.1} parent=1 // pred_region
      %51 = vst [vmem:[#allocation2] sm:$0xff] 0.0
      %52 = vst [vmem:[#allocation2 + $0x8] sm:$0xff] 0.0
      %53 = vst [vmem:[#allocation2 + $0x10] sm:$0xff] 0.0
      %54 = vst [vmem:[#allocation2 + $0x18] sm:$0xff] 0.0
      %55 = vst [vmem:[#allocation2 + $0x20] sm:$0xff] 0.0
      %56 = vst [vmem:[#allocation2 + $0x28] sm:$0xff] 0.0
      %57 = vst [vmem:[#allocation2 + $0x30] sm:$0xff] 0.0
      %58 = vst [vmem:[#allocation2 + $0x38] sm:$0xff] 0.0
      %59 = vst [vmem:[#allocation2 + $0x40] sm:$0xff] 0.0
      %60 = vst [vmem:[#allocation2 + $0x48] sm:$0xff] 0.0
      %61 = vst [vmem:[#allocation2 + $0x50] sm:$0xff] 0.0
      %62 = vst [vmem:[#allocation2 + $0x58] sm:$0xff] 0.0
      %63 = vst [vmem:[#allocation2 + $0x60] sm:$0xff] 0.0
      %64 = vst [vmem:[#allocation2 + $0x68] sm:$0xff] 0.0
      %65 = vst [vmem:[#allocation2 + $0x70] sm:$0xff] 0.0
      %66 = vst [vmem:[#allocation2 + $0x78] sm:$0xff] 0.0
    $region25: #{tpu_custom_call.1} parent=1 // pred_fallthru
      _
    %v67 = vld [vmem:[#allocation2] sm:$0xff]
    %v68 = vld [vmem:[#allocation2 + $0x8] sm:$0xff]
    %v69 = vld [vmem:[#allocation2 + $0x10] sm:$0xff]
    %v70 = vld [vmem:[#allocation2 + $0x18] sm:$0xff]
    %v71 = vld [vmem:[#allocation2 + $0x20] sm:$0xff]
    %v72 = vld [vmem:[#allocation2 + $0x28] sm:$0xff]
    %v73 = vld [vmem:[#allocation2 + $0x30] sm:$0xff]
    %v74 = vld [vmem:[#allocation2 + $0x38] sm:$0xff]
    %v75 = vld [vmem:[#allocation2 + $0x40] sm:$0xff]
    %v76 = vld [vmem:[#allocation2 + $0x48] sm:$0xff]
    %v77 = vld [vmem:[#allocation2 + $0x50] sm:$0xff]
    %v78 = vld [vmem:[#allocation2 + $0x58] sm:$0xff]
    %v79 = vld [vmem:[#allocation2 + $0x60] sm:$0xff]
    %v80 = vld [vmem:[#allocation2 + $0x68] sm:$0xff]
    %v81 = vld [vmem:[#allocation2 + $0x70] sm:$0xff]
    %v82 = vld [vmem:[#allocation2 + $0x78] sm:$0xff]
    %v83 = vld [vmem:[#allocation3] sm:$0xff]
    %v84 = vld [vmem:[#allocation3 + $0x8] sm:$0xff]
    %v85 = vld [vmem:[#allocation3 + $0x10] sm:$0xff]
    %v86 = vld [vmem:[#allocation3 + $0x18] sm:$0xff]
    %v87 = vld [vmem:[#allocation3 + $0x20] sm:$0xff]
    %v88 = vld [vmem:[#allocation3 + $0x28] sm:$0xff]
    %v89 = vld [vmem:[#allocation3 + $0x30] sm:$0xff]
    %v90 = vld [vmem:[#allocation3 + $0x38] sm:$0xff]
    %v91 = vld [vmem:[#allocation3 + $0x40] sm:$0xff]
    %v92 = vld [vmem:[#allocation3 + $0x48] sm:$0xff]
    %v93 = vld [vmem:[#allocation3 + $0x50] sm:$0xff]
    %v94 = vld [vmem:[#allocation3 + $0x58] sm:$0xff]
    %v95 = vld [vmem:[#allocation3 + $0x60] sm:$0xff]
    %v96 = vld [vmem:[#allocation3 + $0x68] sm:$0xff]
    %v97 = vld [vmem:[#allocation3 + $0x70] sm:$0xff]
    %v98 = vld [vmem:[#allocation3 + $0x78] sm:$0xff]
    %v99 = vld [vmem:[#allocation6] sm:$0xff]
    %v100 = vld [vmem:[#allocation6 + $0x8] sm:$0xff]
    %v101 = vld [vmem:[#allocation6 + $0x10] sm:$0xff]
    %v102 = vld [vmem:[#allocation6 + $0x18] sm:$0xff]
    %v103 = vld [vmem:[#allocation6 + $0x20] sm:$0xff]
    %v104 = vld [vmem:[#allocation6 + $0x28] sm:$0xff]
    %v105 = vld [vmem:[#allocation6 + $0x30] sm:$0xff]
    %v106 = vld [vmem:[#allocation6 + $0x38] sm:$0xff]
    %v107 = vld [vmem:[#allocation6 + $0x40] sm:$0xff]
    %v108 = vld [vmem:[#allocation6 + $0x48] sm:$0xff]
    %v109 = vld [vmem:[#allocation6 + $0x50] sm:$0xff]
    %v110 = vld [vmem:[#allocation6 + $0x58] sm:$0xff]
    %v111 = vld [vmem:[#allocation6 + $0x60] sm:$0xff]
    %v112 = vld [vmem:[#allocation6 + $0x68] sm:$0xff]
    %v113 = vld [vmem:[#allocation6 + $0x70] sm:$0xff]
    %v114 = vld [vmem:[#allocation6 + $0x78] sm:$0xff]
    %115 = vmatpush.msra.mxu0 %v114
    %116 = vmatpush.msra.mxu0 %v113
    %117 = vmatpush.msra.mxu0 %v112
    %118 = vmatpush.msra.mxu0 %v111
    %119 = vmatpush.msra.mxu0 %v110
    %120 = vmatpush.msra.mxu0 %v109
    %121 = vmatpush.msra.mxu0 %v108
    %122 = vmatpush.msra.mxu0 %v107
    %123 = vmatpush.msra.mxu0 %v106
    %124 = vmatpush.msra.mxu0 %v105
    %125 = vmatpush.msra.mxu0 %v104
    %126 = vmatpush.msra.mxu0 %v103
    %127 = vmatpush.msra.mxu0 %v102
    %128 = vmatpush.msra.mxu0 %v101
    %129 = vmatpush.msra.mxu0 %v100
    %130 = vmatpush.msra.mxu0 %v99
    %131 = vmatmul.f32.gmra.mxu0 %v83
    %v132 = vpop.f32.mrf.mxu0
    %v133 = vadd.f32 0.0, %v132
    %134 = vmatmul.f32.gmra.mxu0 %v84
    %v135 = vpop.f32.mrf.mxu0
    %v136 = vadd.f32 0.0, %v135
    %137 = vmatmul.f32.gmra.mxu0 %v85
    %v138 = vpop.f32.mrf.mxu0
    %v139 = vadd.f32 0.0, %v138
    %140 = vmatmul.f32.gmra.mxu0 %v86
    %v141 = vpop.f32.mrf.mxu0
    %v142 = vadd.f32 0.0, %v141
    %143 = vmatmul.f32.gmra.mxu0 %v87
    %v144 = vpop.f32.mrf.mxu0
    %v145 = vadd.f32 0.0, %v144
    %146 = vmatmul.f32.gmra.mxu0 %v88
    %v147 = vpop.f32.mrf.mxu0
    %v148 = vadd.f32 0.0, %v147
    %149 = vmatmul.f32.gmra.mxu0 %v89
    %v150 = vpop.f32.mrf.mxu0
    %v151 = vadd.f32 0.0, %v150
    %152 = vmatmul.f32.gmra.mxu0 %v90
    %v153 = vpop.f32.mrf.mxu0
    %v154 = vadd.f32 0.0, %v153
    %155 = vmatmul.f32.gmra.mxu0 %v91
    %v156 = vpop.f32.mrf.mxu0
    %v157 = vadd.f32 0.0, %v156
    %158 = vmatmul.f32.gmra.mxu0 %v92
    %v159 = vpop.f32.mrf.mxu0
    %v160 = vadd.f32 0.0, %v159
    %161 = vmatmul.f32.gmra.mxu0 %v93
    %v162 = vpop.f32.mrf.mxu0
    %v163 = vadd.f32 0.0, %v162
    %164 = vmatmul.f32.gmra.mxu0 %v94
    %v165 = vpop.f32.mrf.mxu0
    %v166 = vadd.f32 0.0, %v165
    %167 = vmatmul.f32.gmra.mxu0 %v95
    %v168 = vpop.f32.mrf.mxu0
    %v169 = vadd.f32 0.0, %v168
    %170 = vmatmul.f32.gmra.mxu0 %v96
    %v171 = vpop.f32.mrf.mxu0
    %v172 = vadd.f32 0.0, %v171
    %173 = vmatmul.f32.gmra.mxu0 %v97
    %v174 = vpop.f32.mrf.mxu0
    %v175 = vadd.f32 0.0, %v174
    %176 = vmatmul.f32.gmra.mxu0 %v98
    %v177 = vpop.f32.mrf.mxu0
    %v178 = vadd.f32 0.0, %v177
    %179 = vdwg.mxu0
    %v180 = vadd.f32 %v67, %v133
    %v181 = vadd.f32 %v68, %v136
    %v182 = vadd.f32 %v69, %v139
    %v183 = vadd.f32 %v70, %v142
    %v184 = vadd.f32 %v71, %v145
    %v185 = vadd.f32 %v72, %v148
    %v186 = vadd.f32 %v73, %v151
    %v187 = vadd.f32 %v74, %v154
    %v188 = vadd.f32 %v75, %v157
    %v189 = vadd.f32 %v76, %v160
    %v190 = vadd.f32 %v77, %v163
    %v191 = vadd.f32 %v78, %v166
    %v192 = vadd.f32 %v79, %v169
    %v193 = vadd.f32 %v80, %v172
    %v194 = vadd.f32 %v81, %v175
    %v195 = vadd.f32 %v82, %v178
    %196 = vst [vmem:[#allocation2] sm:$0xff] %v180
    %197 = vst [vmem:[#allocation2 + $0x8] sm:$0xff] %v181
    %198 = vst [vmem:[#allocation2 + $0x10] sm:$0xff] %v182
    %199 = vst [vmem:[#allocation2 + $0x18] sm:$0xff] %v183
    %200 = vst [vmem:[#allocation2 + $0x20] sm:$0xff] %v184
    %201 = vst [vmem:[#allocation2 + $0x28] sm:$0xff] %v185
    %202 = vst [vmem:[#allocation2 + $0x30] sm:$0xff] %v186
    %203 = vst [vmem:[#allocation2 + $0x38] sm:$0xff] %v187
    %204 = vst [vmem:[#allocation2 + $0x40] sm:$0xff] %v188
    %205 = vst [vmem:[#allocation2 + $0x48] sm:$0xff] %v189
    %206 = vst [vmem:[#allocation2 + $0x50] sm:$0xff] %v190
    %207 = vst [vmem:[#allocation2 + $0x58] sm:$0xff] %v191
    %208 = vst [vmem:[#allocation2 + $0x60] sm:$0xff] %v192
    %209 = vst [vmem:[#allocation2 + $0x68] sm:$0xff] %v193
    %210 = vst [vmem:[#allocation2 + $0x70] sm:$0xff] %v194
    %211 = vst [vmem:[#allocation2 + $0x78] sm:$0xff] %v195
    // Predicated region
    $region26: #{tpu_custom_call.1} parent=1 // pred_check
      %p212 = pneg %p47
    $region27: #{tpu_custom_call.1} parent=1 // pred_check_branch
      %214 = sbr.rel (%p212) target = $region29
    $region28: #{tpu_custom_call.1} parent=1 // pred_region
      %v215 = vld [vmem:[#allocation2] sm:$0xff]
      %v216 = vld [vmem:[#allocation2 + $0x8] sm:$0xff]
      %v217 = vld [vmem:[#allocation2 + $0x10] sm:$0xff]
      %v218 = vld [vmem:[#allocation2 + $0x18] sm:$0xff]
      %v219 = vld [vmem:[#allocation2 + $0x20] sm:$0xff]
      %v220 = vld [vmem:[#allocation2 + $0x28] sm:$0xff]
      %v221 = vld [vmem:[#allocation2 + $0x30] sm:$0xff]
      %v222 = vld [vmem:[#allocation2 + $0x38] sm:$0xff]
      %v223 = vld [vmem:[#allocation2 + $0x40] sm:$0xff]
      %v224 = vld [vmem:[#allocation2 + $0x48] sm:$0xff]
      %v225 = vld [vmem:[#allocation2 + $0x50] sm:$0xff]
      %v226 = vld [vmem:[#allocation2 + $0x58] sm:$0xff]
      %v227 = vld [vmem:[#allocation2 + $0x60] sm:$0xff]
      %v228 = vld [vmem:[#allocation2 + $0x68] sm:$0xff]
      %v229 = vld [vmem:[#allocation2 + $0x70] sm:$0xff]
      %v230 = vld [vmem:[#allocation2 + $0x78] sm:$0xff]
      %v231 = vld [vmem:[%s2] sm:$0x1]
      %v233 = vperm.slane %v231, 0
      %v235 = vadd.f32 %v215, %v233
      %v236 = vadd.f32 %v216, %v233
      %v237 = vadd.f32 %v217, %v233
      %v238 = vadd.f32 %v218, %v233
      %v239 = vadd.f32 %v219, %v233
      %v240 = vadd.f32 %v220, %v233
      %v241 = vadd.f32 %v221, %v233
      %v242 = vadd.f32 %v222, %v233
      %v243 = vadd.f32 %v223, %v233
      %v244 = vadd.f32 %v224, %v233
      %v245 = vadd.f32 %v225, %v233
      %v246 = vadd.f32 %v226, %v233
      %v247 = vadd.f32 %v227, %v233
      %v248 = vadd.f32 %v228, %v233
      %v249 = vadd.f32 %v229, %v233
      %v250 = vadd.f32 %v230, %v233
      %v251 = vxor.u32 %v235, 2147483648
      %v252 = vxor.u32 %v236, 2147483648
      %v253 = vxor.u32 %v237, 2147483648
      %v254 = vxor.u32 %v238, 2147483648
      %v255 = vxor.u32 %v239, 2147483648
      %v256 = vxor.u32 %v240, 2147483648
      %v257 = vxor.u32 %v241, 2147483648
      %v258 = vxor.u32 %v242, 2147483648
      %v259 = vxor.u32 %v243, 2147483648
      %v260 = vxor.u32 %v244, 2147483648
      %v261 = vxor.u32 %v245, 2147483648
      %v262 = vxor.u32 %v246, 2147483648
      %v263 = vxor.u32 %v247, 2147483648
      %v264 = vxor.u32 %v248, 2147483648
      %v265 = vxor.u32 %v249, 2147483648
      %v266 = vxor.u32 %v250, 2147483648
      %v267 = vmul.f32 %v251, 1.442695
      %v268 = vpow.pop %v267
      %v269 = vmul.f32 %v252, 1.442695
      %v270 = vpow.pop %v269
      %v271 = vmul.f32 %v253, 1.442695
      %v272 = vpow.pop %v271
      %v273 = vmul.f32 %v254, 1.442695
      %v274 = vpow.pop %v273
      %v275 = vmul.f32 %v255, 1.442695
      %v276 = vpow.pop %v275
      %v277 = vmul.f32 %v256, 1.442695
      %v278 = vpow.pop %v277
      %v279 = vmul.f32 %v257, 1.442695
      %v280 = vpow.pop %v279
      %v281 = vmul.f32 %v258, 1.442695
      %v282 = vpow.pop %v281
      %v283 = vmul.f32 %v259, 1.442695
      %v284 = vpow.pop %v283
      %v285 = vmul.f32 %v260, 1.442695
      %v286 = vpow.pop %v285
      %v287 = vmul.f32 %v261, 1.442695
      %v288 = vpow.pop %v287
      %v289 = vmul.f32 %v262, 1.442695
      %v290 = vpow.pop %v289
      %v291 = vmul.f32 %v263, 1.442695
      %v292 = vpow.pop %v291
      %v293 = vmul.f32 %v264, 1.442695
      %v294 = vpow.pop %v293
      %v295 = vmul.f32 %v265, 1.442695
      %v296 = vpow.pop %v295
      %v297 = vmul.f32 %v266, 1.442695
      %v298 = vpow.pop %v297
      %v299 = vadd.f32 %v268, 1.0
      %v300 = vadd.f32 %v270, 1.0
      %v301 = vadd.f32 %v272, 1.0
      %v302 = vadd.f32 %v274, 1.0
      %v303 = vadd.f32 %v276, 1.0
      %v304 = vadd.f32 %v278, 1.0
      %v305 = vadd.f32 %v280, 1.0
      %v306 = vadd.f32 %v282, 1.0
      %v307 = vadd.f32 %v284, 1.0
      %v308 = vadd.f32 %v286, 1.0
      %v309 = vadd.f32 %v288, 1.0
      %v310 = vadd.f32 %v290, 1.0
      %v311 = vadd.f32 %v292, 1.0
      %v312 = vadd.f32 %v294, 1.0
      %v313 = vadd.f32 %v296, 1.0
      %v314 = vadd.f32 %v298, 1.0
      %v315 = vrcp.pop %v299
      %v316 = vmul.f32 %v299, %v315
      %v317 = vsub.f32 1.0, %v316
      %v318 = vmul.f32 %v315, %v317
      %v319 = vadd.f32 %v315, %v318
      %vm320 = vweird.f32 %v299
      %vm321 = vweird.f32 %v315
      %vm322 = vmor %vm320, %vm321
      %v323 = vsel %vm322, %v315, %v319
      %v324 = vand.u32 2147483647, %v299
      %vm325 = vcmp.eq.f32.partialorder %v324, 8.507059e+37
      %v326 = vand.u32 %v299, 2147483648
      %v327 = vor.u32 1.1754944e-38, %v326
      %v328 = vsel %vm325, %v327, %v323
      %v329 = vmul.f32 1.0, %v328
      %v330 = vrcp.pop %v300
      %v331 = vmul.f32 %v300, %v330
      %v332 = vsub.f32 1.0, %v331
      %v333 = vmul.f32 %v330, %v332
      %v334 = vadd.f32 %v330, %v333
      %vm335 = vweird.f32 %v300
      %vm336 = vweird.f32 %v330
      %vm337 = vmor %vm335, %vm336
      %v338 = vsel %vm337, %v330, %v334
      %v339 = vand.u32 2147483647, %v300
      %vm340 = vcmp.eq.f32.partialorder %v339, 8.507059e+37
      %v341 = vand.u32 %v300, 2147483648
      %v342 = vor.u32 1.1754944e-38, %v341
      %v343 = vsel %vm340, %v342, %v338
      %v344 = vmul.f32 1.0, %v343
      %v345 = vrcp.pop %v301
      %v346 = vmul.f32 %v301, %v345
      %v347 = vsub.f32 1.0, %v346
      %v348 = vmul.f32 %v345, %v347
      %v349 = vadd.f32 %v345, %v348
      %vm350 = vweird.f32 %v301
      %vm351 = vweird.f32 %v345
      %vm352 = vmor %vm350, %vm351
      %v353 = vsel %vm352, %v345, %v349
      %v354 = vand.u32 2147483647, %v301
      %vm355 = vcmp.eq.f32.partialorder %v354, 8.507059e+37
      %v356 = vand.u32 %v301, 2147483648
      %v357 = vor.u32 1.1754944e-38, %v356
      %v358 = vsel %vm355, %v357, %v353
      %v359 = vmul.f32 1.0, %v358
      %v360 = vrcp.pop %v302
      %v361 = vmul.f32 %v302, %v360
      %v362 = vsub.f32 1.0, %v361
      %v363 = vmul.f32 %v360, %v362
      %v364 = vadd.f32 %v360, %v363
      %vm365 = vweird.f32 %v302
      %vm366 = vweird.f32 %v360
      %vm367 = vmor %vm365, %vm366
      %v368 = vsel %vm367, %v360, %v364
      %v369 = vand.u32 2147483647, %v302
      %vm370 = vcmp.eq.f32.partialorder %v369, 8.507059e+37
      %v371 = vand.u32 %v302, 2147483648
      %v372 = vor.u32 1.1754944e-38, %v371
      %v373 = vsel %vm370, %v372, %v368
      %v374 = vmul.f32 1.0, %v373
      %v375 = vrcp.pop %v303
      %v376 = vmul.f32 %v303, %v375
      %v377 = vsub.f32 1.0, %v376
      %v378 = vmul.f32 %v375, %v377
      %v379 = vadd.f32 %v375, %v378
      %vm380 = vweird.f32 %v303
      %vm381 = vweird.f32 %v375
      %vm382 = vmor %vm380, %vm381
      %v383 = vsel %vm382, %v375, %v379
      %v384 = vand.u32 2147483647, %v303
      %vm385 = vcmp.eq.f32.partialorder %v384, 8.507059e+37
      %v386 = vand.u32 %v303, 2147483648
      %v387 = vor.u32 1.1754944e-38, %v386
      %v388 = vsel %vm385, %v387, %v383
      %v389 = vmul.f32 1.0, %v388
      %v390 = vrcp.pop %v304
      %v391 = vmul.f32 %v304, %v390
      %v392 = vsub.f32 1.0, %v391
      %v393 = vmul.f32 %v390, %v392
      %v394 = vadd.f32 %v390, %v393
      %vm395 = vweird.f32 %v304
      %vm396 = vweird.f32 %v390
      %vm397 = vmor %vm395, %vm396
      %v398 = vsel %vm397, %v390, %v394
      %v399 = vand.u32 2147483647, %v304
      %vm400 = vcmp.eq.f32.partialorder %v399, 8.507059e+37
      %v401 = vand.u32 %v304, 2147483648
      %v402 = vor.u32 1.1754944e-38, %v401
      %v403 = vsel %vm400, %v402, %v398
      %v404 = vmul.f32 1.0, %v403
      %v405 = vrcp.pop %v305
      %v406 = vmul.f32 %v305, %v405
      %v407 = vsub.f32 1.0, %v406
      %v408 = vmul.f32 %v405, %v407
      %v409 = vadd.f32 %v405, %v408
      %vm410 = vweird.f32 %v305
      %vm411 = vweird.f32 %v405
      %vm412 = vmor %vm410, %vm411
      %v413 = vsel %vm412, %v405, %v409
      %v414 = vand.u32 2147483647, %v305
      %vm415 = vcmp.eq.f32.partialorder %v414, 8.507059e+37
      %v416 = vand.u32 %v305, 2147483648
      %v417 = vor.u32 1.1754944e-38, %v416
      %v418 = vsel %vm415, %v417, %v413
      %v419 = vmul.f32 1.0, %v418
      %v420 = vrcp.pop %v306
      %v421 = vmul.f32 %v306, %v420
      %v422 = vsub.f32 1.0, %v421
      %v423 = vmul.f32 %v420, %v422
      %v424 = vadd.f32 %v420, %v423
      %vm425 = vweird.f32 %v306
      %vm426 = vweird.f32 %v420
      %vm427 = vmor %vm425, %vm426
      %v428 = vsel %vm427, %v420, %v424
      %v429 = vand.u32 2147483647, %v306
      %vm430 = vcmp.eq.f32.partialorder %v429, 8.507059e+37
      %v431 = vand.u32 %v306, 2147483648
      %v432 = vor.u32 1.1754944e-38, %v431
      %v433 = vsel %vm430, %v432, %v428
      %v434 = vmul.f32 1.0, %v433
      %v435 = vrcp.pop %v307
      %v436 = vmul.f32 %v307, %v435
      %v437 = vsub.f32 1.0, %v436
      %v438 = vmul.f32 %v435, %v437
      %v439 = vadd.f32 %v435, %v438
      %vm440 = vweird.f32 %v307
      %vm441 = vweird.f32 %v435
      %vm442 = vmor %vm440, %vm441
      %v443 = vsel %vm442, %v435, %v439
      %v444 = vand.u32 2147483647, %v307
      %vm445 = vcmp.eq.f32.partialorder %v444, 8.507059e+37
      %v446 = vand.u32 %v307, 2147483648
      %v447 = vor.u32 1.1754944e-38, %v446
      %v448 = vsel %vm445, %v447, %v443
      %v449 = vmul.f32 1.0, %v448
      %v450 = vrcp.pop %v308
      %v451 = vmul.f32 %v308, %v450
      %v452 = vsub.f32 1.0, %v451
      %v453 = vmul.f32 %v450, %v452
      %v454 = vadd.f32 %v450, %v453
      %vm455 = vweird.f32 %v308
      %vm456 = vweird.f32 %v450
      %vm457 = vmor %vm455, %vm456
      %v458 = vsel %vm457, %v450, %v454
      %v459 = vand.u32 2147483647, %v308
      %vm460 = vcmp.eq.f32.partialorder %v459, 8.507059e+37
      %v461 = vand.u32 %v308, 2147483648
      %v462 = vor.u32 1.1754944e-38, %v461
      %v463 = vsel %vm460, %v462, %v458
      %v464 = vmul.f32 1.0, %v463
      %v465 = vrcp.pop %v309
      %v466 = vmul.f32 %v309, %v465
      %v467 = vsub.f32 1.0, %v466
      %v468 = vmul.f32 %v465, %v467
      %v469 = vadd.f32 %v465, %v468
      %vm470 = vweird.f32 %v309
      %vm471 = vweird.f32 %v465
      %vm472 = vmor %vm470, %vm471
      %v473 = vsel %vm472, %v465, %v469
      %v474 = vand.u32 2147483647, %v309
      %vm475 = vcmp.eq.f32.partialorder %v474, 8.507059e+37
      %v476 = vand.u32 %v309, 2147483648
      %v477 = vor.u32 1.1754944e-38, %v476
      %v478 = vsel %vm475, %v477, %v473
      %v479 = vmul.f32 1.0, %v478
      %v480 = vrcp.pop %v310
      %v481 = vmul.f32 %v310, %v480
      %v482 = vsub.f32 1.0, %v481
      %v483 = vmul.f32 %v480, %v482
      %v484 = vadd.f32 %v480, %v483
      %vm485 = vweird.f32 %v310
      %vm486 = vweird.f32 %v480
      %vm487 = vmor %vm485, %vm486
      %v488 = vsel %vm487, %v480, %v484
      %v489 = vand.u32 2147483647, %v310
      %vm490 = vcmp.eq.f32.partialorder %v489, 8.507059e+37
      %v491 = vand.u32 %v310, 2147483648
      %v492 = vor.u32 1.1754944e-38, %v491
      %v493 = vsel %vm490, %v492, %v488
      %v494 = vmul.f32 1.0, %v493
      %v495 = vrcp.pop %v311
      %v496 = vmul.f32 %v311, %v495
      %v497 = vsub.f32 1.0, %v496
      %v498 = vmul.f32 %v495, %v497
      %v499 = vadd.f32 %v495, %v498
      %vm500 = vweird.f32 %v311
      %vm501 = vweird.f32 %v495
      %vm502 = vmor %vm500, %vm501
      %v503 = vsel %vm502, %v495, %v499
      %v504 = vand.u32 2147483647, %v311
      %vm505 = vcmp.eq.f32.partialorder %v504, 8.507059e+37
      %v506 = vand.u32 %v311, 2147483648
      %v507 = vor.u32 1.1754944e-38, %v506
      %v508 = vsel %vm505, %v507, %v503
      %v509 = vmul.f32 1.0, %v508
      %v510 = vrcp.pop %v312
      %v511 = vmul.f32 %v312, %v510
      %v512 = vsub.f32 1.0, %v511
      %v513 = vmul.f32 %v510, %v512
      %v514 = vadd.f32 %v510, %v513
      %vm515 = vweird.f32 %v312
      %vm516 = vweird.f32 %v510
      %vm517 = vmor %vm515, %vm516
      %v518 = vsel %vm517, %v510, %v514
      %v519 = vand.u32 2147483647, %v312
      %vm520 = vcmp.eq.f32.partialorder %v519, 8.507059e+37
      %v521 = vand.u32 %v312, 2147483648
      %v522 = vor.u32 1.1754944e-38, %v521
      %v523 = vsel %vm520, %v522, %v518
      %v524 = vmul.f32 1.0, %v523
      %v525 = vrcp.pop %v313
      %v526 = vmul.f32 %v313, %v525
      %v527 = vsub.f32 1.0, %v526
      %v528 = vmul.f32 %v525, %v527
      %v529 = vadd.f32 %v525, %v528
      %vm530 = vweird.f32 %v313
      %vm531 = vweird.f32 %v525
      %vm532 = vmor %vm530, %vm531
      %v533 = vsel %vm532, %v525, %v529
      %v534 = vand.u32 2147483647, %v313
      %vm535 = vcmp.eq.f32.partialorder %v534, 8.507059e+37
      %v536 = vand.u32 %v313, 2147483648
      %v537 = vor.u32 1.1754944e-38, %v536
      %v538 = vsel %vm535, %v537, %v533
      %v539 = vmul.f32 1.0, %v538
      %v540 = vrcp.pop %v314
      %v541 = vmul.f32 %v314, %v540
      %v542 = vsub.f32 1.0, %v541
      %v543 = vmul.f32 %v540, %v542
      %v544 = vadd.f32 %v540, %v543
      %vm545 = vweird.f32 %v314
      %vm546 = vweird.f32 %v540
      %vm547 = vmor %vm545, %vm546
      %v548 = vsel %vm547, %v540, %v544
      %v549 = vand.u32 2147483647, %v314
      %vm550 = vcmp.eq.f32.partialorder %v549, 8.507059e+37
      %v551 = vand.u32 %v314, 2147483648
      %v552 = vor.u32 1.1754944e-38, %v551
      %v553 = vsel %vm550, %v552, %v548
      %v554 = vmul.f32 1.0, %v553
      %555 = vst [vmem:[#allocation8] sm:$0xff] %v329
      %556 = vst [vmem:[#allocation8 + $0x8] sm:$0xff] %v344
      %557 = vst [vmem:[#allocation8 + $0x10] sm:$0xff] %v359
      %558 = vst [vmem:[#allocation8 + $0x18] sm:$0xff] %v374
      %559 = vst [vmem:[#allocation8 + $0x20] sm:$0xff] %v389
      %560 = vst [vmem:[#allocation8 + $0x28] sm:$0xff] %v404
      %561 = vst [vmem:[#allocation8 + $0x30] sm:$0xff] %v419
      %562 = vst [vmem:[#allocation8 + $0x38] sm:$0xff] %v434
      %563 = vst [vmem:[#allocation8 + $0x40] sm:$0xff] %v449
      %564 = vst [vmem:[#allocation8 + $0x48] sm:$0xff] %v464
      %565 = vst [vmem:[#allocation8 + $0x50] sm:$0xff] %v479
      %566 = vst [vmem:[#allocation8 + $0x58] sm:$0xff] %v494
      %567 = vst [vmem:[#allocation8 + $0x60] sm:$0xff] %v509
      %568 = vst [vmem:[#allocation8 + $0x68] sm:$0xff] %v524
      %569 = vst [vmem:[#allocation8 + $0x70] sm:$0xff] %v539
      %570 = vst [vmem:[#allocation8 + $0x78] sm:$0xff] %v554
    $region29: #{tpu_custom_call.1} parent=1 // pred_fallthru
      _
    // Predicated region
    $region30: #{tpu_custom_call.1} parent=1 // pred_check
      _
    $region31: #{tpu_custom_call.1} parent=1 // pred_check_branch
      %572 = sbr.rel (0) target = $region33
    $region32: #{tpu_custom_call.1} parent=1 // pred_region
      %574 = vsyncadd [#allocation5], 0
      %s575 = sshll.u32 [#allocation8], 4
      %s576 = int_to_ptr.vmem [resolvable:$true] %s575
      %s577 = sshll.u32 %s3, 4
      %s578 = int_to_ptr.hbm [resolvable:$true] %s577
      %583 = dma.vmem_to_hbm [thread:$0]  %s576, 2048, %s578, [#allocation5], 128, 128, 8
    $region33: #{tpu_custom_call.1} parent=1 // pred_fallthru
      _
    // Predicated region
    $region34: #{tpu_custom_call.1} parent=1 // pred_check
      _
    $region35: #{tpu_custom_call.1} parent=1 // pred_check_branch
      %585 = sbr.rel (0) target = $region37
    $region36: #{tpu_custom_call.1} parent=1 // pred_region
      %587 = dma.done [#allocation5], 2048
    $region37: #{tpu_custom_call.1} parent=1 // pred_fallthru
      _
    %588 = vsyncpa [#allocation4], 1
    %589 = vsyncpa [#allocation7], 1
    %590 = vsyncpa [#allocation5], 1

</llo_original>
